<compile_context>
chip_gen: v7x
topology: tpu7x:2x2x1
jax: 0.10.0
libtpu: 0.0.40
codegen_flags: <defaults>
</compile_context>

<pallas_src>
import jax
import jax.numpy as jnp
from jax.experimental import pallas as pl
from jax.experimental.pallas import tpu as pltpu

_NUMCLASS = 10
_H1, _H2, _H3 = 200, 100, 50
_EPS = 1e-5

_VMEM = pl.BlockSpec(memory_space=pltpu.MemorySpace.VMEM)


# ---------------------------------------------------------------------------
# Fused kernel
# ---------------------------------------------------------------------------
def _bn_train(x, gamma, beta):
    """Training-mode BatchNorm1d over the batch (rows), one-pass statistics."""
    mean = jnp.mean(x, axis=0, keepdims=True)               # (1, H)
    mean_sq = jnp.mean(x * x, axis=0, keepdims=True)         # (1, H)
    var = jnp.maximum(mean_sq - mean * mean, 0.0)             # biased variance
    return (x - mean) * jax.lax.rsqrt(var + _EPS) * gamma + beta


def _mlp_fused_kernel(x_ref,
                      w1_ref, b1_ref, g1_ref, be1_ref,
                      w2_ref, b2_ref, g2_ref, be2_ref,
                      w3_ref, b3_ref, g3_ref, be3_ref,
                      w6_ref, b6_ref,
                      o_ref):
    x = x_ref[...]                                            # (B, D_in)

    # h1_relu = relu(linear1(x))
    h1 = jnp.dot(x, w1_ref[...], preferred_element_type=jnp.float32) + b1_ref[...]
    h1 = jnp.maximum(h1, 0.0)

    # h2_relu = relu(linear2(bn1(h1_relu)))
    h1n = _bn_train(h1, g1_ref[...], be1_ref[...])
    h2 = jnp.dot(h1n, w2_ref[...], preferred_element_type=jnp.float32) + b2_ref[...]
    h2 = jnp.maximum(h2, 0.0)

    # h3_relu = relu(linear3(bn2(h2_relu)))
    h2n = _bn_train(h2, g2_ref[...], be2_ref[...])
    h3 = jnp.dot(h2n, w3_ref[...], preferred_element_type=jnp.float32) + b3_ref[...]
    h3 = jnp.maximum(h3, 0.0)

    # y_pred = linear6(bn3(h3_relu))
    h3n = _bn_train(h3, g3_ref[...], be3_ref[...])
    y = jnp.dot(h3n, w6_ref[...], preferred_element_type=jnp.float32) + b6_ref[...]

    o_ref[...] = y.astype(o_ref.dtype)


# ---------------------------------------------------------------------------
# Wrapper
# ---------------------------------------------------------------------------
@jax.jit
def forward(params, x):
    B = x.shape[0]
    args = (
        x,
        params["w1"], params["b1"], params["g1"], params["be1"],
        params["w2"], params["b2"], params["g2"], params["be2"],
        params["w3"], params["b3"], params["g3"], params["be3"],
        params["w6"], params["b6"],
    )
    return pl.pallas_call(
        _mlp_fused_kernel,
        out_shape=jax.ShapeDtypeStruct((B, _NUMCLASS), jnp.float32),
        in_specs=[_VMEM] * len(args),
        out_specs=_VMEM,
        compiler_params=pltpu.CompilerParams(vmem_limit_bytes=32 * 1024 * 1024),
    )(*args)


# ---------------------------------------------------------------------------
# Parameter init (PyTorch nn.Linear default: U(-1/sqrt(fan_in), 1/sqrt(fan_in)))
# ---------------------------------------------------------------------------
def _init_linear(key, fan_in, fan_out):
    kw, kb = jax.random.split(key)
    bound = 1.0 / float(fan_in) ** 0.5
    w = jax.random.uniform(kw, (fan_in, fan_out), jnp.float32, -bound, bound)
    b = jax.random.uniform(kb, (1, fan_out), jnp.float32, -bound, bound)
    return w, b


def init_params(key, d_in, numclass=_NUMCLASS):
    keys = jax.random.split(key, 4)
    p = {}
    p["w1"], p["b1"] = _init_linear(keys[0], d_in, _H1)
    p["w2"], p["b2"] = _init_linear(keys[1], _H1, _H2)
    p["w3"], p["b3"] = _init_linear(keys[2], _H2, _H3)
    p["w6"], p["b6"] = _init_linear(keys[3], _H3, numclass)
    for name, h in (("1", _H1), ("2", _H2), ("3", _H3)):
        p["g" + name] = jnp.ones((1, h), jnp.float32)    # BatchNorm gamma
        p["be" + name] = jnp.zeros((1, h), jnp.float32)  # BatchNorm beta
    return p


# ---------------------------------------------------------------------------
# Pure-JAX reference (for a correctness sanity check)
# ---------------------------------------------------------------------------
def _ref_forward(params, x):
    hi = jax.lax.Precision.HIGHEST

    def bn(v, g, b):
        mean = jnp.mean(v, axis=0, keepdims=True)
        var = jnp.mean((v - mean) ** 2, axis=0, keepdims=True)
        return (v - mean) * jax.lax.rsqrt(var + _EPS) * g + b

    h1 = jnp.maximum(jnp.dot(x, params["w1"], precision=hi) + params["b1"], 0.0)
    h2 = jnp.maximum(
        jnp.dot(bn(h1, params["g1"], params["be1"]), params["w2"], precision=hi)
        + params["b2"], 0.0)
    h3 = jnp.maximum(
        jnp.dot(bn(h2, params["g2"], params["be2"]), params["w3"], precision=hi)
        + params["b3"], 0.0)
    return (jnp.dot(bn(h3, params["g3"], params["be3"]), params["w6"], precision=hi)
            + params["b6"])


if __name__ == "__main__":
    key = jax.random.PRNGKey(0)
    kparam, kx = jax.random.split(key)

    D_IN, BATCH = 784, 8          # MNIST-like flattened input, small batch
    params = init_params(kparam, D_IN)
    x = jax.random.normal(kx, (BATCH, D_IN), jnp.float32)

    out = jax.block_until_ready(forward(params, x))
    assert out.shape == (BATCH, _NUMCLASS), out.shape

    ref = jax.block_until_ready(_ref_forward(params, x))
    assert jnp.allclose(out, ref, rtol=2e-2, atol=2e-2), (
        float(jnp.max(jnp.abs(out - ref))))

    print("KERNEL_OK")
</pallas_src>

<mosaic_0001>
module attributes {stable_mosaic.version = 11 : i64} {
  func.func @_mlp_fused_kernel(%arg0: memref<8x784xf32, #tpu.memory_space<vmem>>, %arg1: memref<784x200xf32, #tpu.memory_space<vmem>>, %arg2: memref<1x200xf32, #tpu.memory_space<vmem>>, %arg3: memref<1x200xf32, #tpu.memory_space<vmem>>, %arg4: memref<1x200xf32, #tpu.memory_space<vmem>>, %arg5: memref<200x100xf32, #tpu.memory_space<vmem>>, %arg6: memref<1x100xf32, #tpu.memory_space<vmem>>, %arg7: memref<1x100xf32, #tpu.memory_space<vmem>>, %arg8: memref<1x100xf32, #tpu.memory_space<vmem>>, %arg9: memref<100x50xf32, #tpu.memory_space<vmem>>, %arg10: memref<1x50xf32, #tpu.memory_space<vmem>>, %arg11: memref<1x50xf32, #tpu.memory_space<vmem>>, %arg12: memref<1x50xf32, #tpu.memory_space<vmem>>, %arg13: memref<50x10xf32, #tpu.memory_space<vmem>>, %arg14: memref<1x10xf32, #tpu.memory_space<vmem>>, %arg15: memref<8x10xf32, #tpu.memory_space<vmem>>) attributes {dimension_semantics = [], scalar_prefetch = 0 : i64, scratch_operands = 0 : i64, tpu.core_type = #tpu.core_type<tc>} {
    %c0 = arith.constant 0 : index
    %c0_0 = arith.constant 0 : index
    %0 = vector.load %arg0[%c0, %c0_0] : memref<8x784xf32, #tpu.memory_space<vmem>>, vector<8x784xf32>
    %c0_1 = arith.constant 0 : index
    %c0_2 = arith.constant 0 : index
    %1 = vector.load %arg1[%c0_1, %c0_2] : memref<784x200xf32, #tpu.memory_space<vmem>>, vector<784x200xf32>
    %cst = arith.constant dense<0.000000e+00> : vector<8x200xf32>
    %2 = tpu.matmul %0, %1, %cst {dimension_numbers = #tpu.dot_dimension_numbers<[1], [0], [0], [1], [0, 0, 1, 1], [], []>} : vector<8x784xf32>, vector<784x200xf32>, vector<8x200xf32> -> vector<8x200xf32>
    %c0_3 = arith.constant 0 : index
    %c0_4 = arith.constant 0 : index
    %3 = vector.load %arg2[%c0_3, %c0_4] : memref<1x200xf32, #tpu.memory_space<vmem>>, vector<1x200xf32>
    %4 = vector.broadcast %3 : vector<1x200xf32> to vector<8x200xf32>
    %5 = arith.addf %2, %4 : vector<8x200xf32>
    %cst_5 = arith.constant 0.000000e+00 : f32
    %6 = vector.broadcast %cst_5 : f32 to vector<8x200xf32>
    %7 = arith.maximumf %5, %6 : vector<8x200xf32>
    %c0_6 = arith.constant 0 : index
    %c0_7 = arith.constant 0 : index
    %8 = vector.load %arg3[%c0_6, %c0_7] : memref<1x200xf32, #tpu.memory_space<vmem>>, vector<1x200xf32>
    %c0_8 = arith.constant 0 : index
    %c0_9 = arith.constant 0 : index
    %9 = vector.load %arg4[%c0_8, %c0_9] : memref<1x200xf32, #tpu.memory_space<vmem>>, vector<1x200xf32>
    %cst_10 = arith.constant dense<0.000000e+00> : vector<200xf32>
    %10 = vector.multi_reduction <add>, %7, %cst_10 [0] : vector<8x200xf32> to vector<200xf32>
    %11 = vector.shape_cast %10 : vector<200xf32> to vector<1x200xf32>
    %cst_11 = arith.constant 8.000000e+00 : f32
    %12 = vector.broadcast %cst_11 : f32 to vector<1x200xf32>
    %13 = arith.divf %11, %12 : vector<1x200xf32>
    %14 = arith.mulf %7, %7 : vector<8x200xf32>
    %cst_12 = arith.constant dense<0.000000e+00> : vector<200xf32>
    %15 = vector.multi_reduction <add>, %14, %cst_12 [0] : vector<8x200xf32> to vector<200xf32>
    %16 = vector.shape_cast %15 : vector<200xf32> to vector<1x200xf32>
    %cst_13 = arith.constant 8.000000e+00 : f32
    %17 = vector.broadcast %cst_13 : f32 to vector<1x200xf32>
    %18 = arith.divf %16, %17 : vector<1x200xf32>
    %19 = arith.mulf %13, %13 : vector<1x200xf32>
    %20 = arith.subf %18, %19 : vector<1x200xf32>
    %cst_14 = arith.constant 0.000000e+00 : f32
    %21 = vector.broadcast %cst_14 : f32 to vector<1x200xf32>
    %22 = arith.maximumf %20, %21 : vector<1x200xf32>
    %23 = vector.broadcast %13 : vector<1x200xf32> to vector<8x200xf32>
    %24 = arith.subf %7, %23 : vector<8x200xf32>
    %cst_15 = arith.constant 9.99999974E-6 : f32
    %25 = vector.broadcast %cst_15 : f32 to vector<1x200xf32>
    %26 = arith.addf %22, %25 : vector<1x200xf32>
    %27 = math.rsqrt %26 : vector<1x200xf32>
    %28 = vector.broadcast %27 : vector<1x200xf32> to vector<8x200xf32>
    %29 = arith.mulf %24, %28 : vector<8x200xf32>
    %30 = vector.broadcast %8 : vector<1x200xf32> to vector<8x200xf32>
    %31 = arith.mulf %29, %30 : vector<8x200xf32>
    %32 = vector.broadcast %9 : vector<1x200xf32> to vector<8x200xf32>
    %33 = arith.addf %31, %32 : vector<8x200xf32>
    %c0_16 = arith.constant 0 : index
    %c0_17 = arith.constant 0 : index
    %34 = vector.load %arg5[%c0_16, %c0_17] : memref<200x100xf32, #tpu.memory_space<vmem>>, vector<200x100xf32>
    %cst_18 = arith.constant dense<0.000000e+00> : vector<8x100xf32>
    %35 = tpu.matmul %33, %34, %cst_18 {dimension_numbers = #tpu.dot_dimension_numbers<[1], [0], [0], [1], [0, 0, 1, 1], [], []>} : vector<8x200xf32>, vector<200x100xf32>, vector<8x100xf32> -> vector<8x100xf32>
    %c0_19 = arith.constant 0 : index
    %c0_20 = arith.constant 0 : index
    %36 = vector.load %arg6[%c0_19, %c0_20] : memref<1x100xf32, #tpu.memory_space<vmem>>, vector<1x100xf32>
    %37 = vector.broadcast %36 : vector<1x100xf32> to vector<8x100xf32>
    %38 = arith.addf %35, %37 : vector<8x100xf32>
    %cst_21 = arith.constant 0.000000e+00 : f32
    %39 = vector.broadcast %cst_21 : f32 to vector<8x100xf32>
    %40 = arith.maximumf %38, %39 : vector<8x100xf32>
    %c0_22 = arith.constant 0 : index
    %c0_23 = arith.constant 0 : index
    %41 = vector.load %arg7[%c0_22, %c0_23] : memref<1x100xf32, #tpu.memory_space<vmem>>, vector<1x100xf32>
    %c0_24 = arith.constant 0 : index
    %c0_25 = arith.constant 0 : index
    %42 = vector.load %arg8[%c0_24, %c0_25] : memref<1x100xf32, #tpu.memory_space<vmem>>, vector<1x100xf32>
    %cst_26 = arith.constant dense<0.000000e+00> : vector<100xf32>
    %43 = vector.multi_reduction <add>, %40, %cst_26 [0] : vector<8x100xf32> to vector<100xf32>
    %44 = vector.shape_cast %43 : vector<100xf32> to vector<1x100xf32>
    %cst_27 = arith.constant 8.000000e+00 : f32
    %45 = vector.broadcast %cst_27 : f32 to vector<1x100xf32>
    %46 = arith.divf %44, %45 : vector<1x100xf32>
    %47 = arith.mulf %40, %40 : vector<8x100xf32>
    %cst_28 = arith.constant dense<0.000000e+00> : vector<100xf32>
    %48 = vector.multi_reduction <add>, %47, %cst_28 [0] : vector<8x100xf32> to vector<100xf32>
    %49 = vector.shape_cast %48 : vector<100xf32> to vector<1x100xf32>
    %cst_29 = arith.constant 8.000000e+00 : f32
    %50 = vector.broadcast %cst_29 : f32 to vector<1x100xf32>
    %51 = arith.divf %49, %50 : vector<1x100xf32>
    %52 = arith.mulf %46, %46 : vector<1x100xf32>
    %53 = arith.subf %51, %52 : vector<1x100xf32>
    %cst_30 = arith.constant 0.000000e+00 : f32
    %54 = vector.broadcast %cst_30 : f32 to vector<1x100xf32>
    %55 = arith.maximumf %53, %54 : vector<1x100xf32>
    %56 = vector.broadcast %46 : vector<1x100xf32> to vector<8x100xf32>
    %57 = arith.subf %40, %56 : vector<8x100xf32>
    %cst_31 = arith.constant 9.99999974E-6 : f32
    %58 = vector.broadcast %cst_31 : f32 to vector<1x100xf32>
    %59 = arith.addf %55, %58 : vector<1x100xf32>
    %60 = math.rsqrt %59 : vector<1x100xf32>
    %61 = vector.broadcast %60 : vector<1x100xf32> to vector<8x100xf32>
    %62 = arith.mulf %57, %61 : vector<8x100xf32>
    %63 = vector.broadcast %41 : vector<1x100xf32> to vector<8x100xf32>
    %64 = arith.mulf %62, %63 : vector<8x100xf32>
    %65 = vector.broadcast %42 : vector<1x100xf32> to vector<8x100xf32>
    %66 = arith.addf %64, %65 : vector<8x100xf32>
    %c0_32 = arith.constant 0 : index
    %c0_33 = arith.constant 0 : index
    %67 = vector.load %arg9[%c0_32, %c0_33] : memref<100x50xf32, #tpu.memory_space<vmem>>, vector<100x50xf32>
    %cst_34 = arith.constant dense<0.000000e+00> : vector<8x50xf32>
    %68 = tpu.matmul %66, %67, %cst_34 {dimension_numbers = #tpu.dot_dimension_numbers<[1], [0], [0], [1], [0, 0, 1, 1], [], []>} : vector<8x100xf32>, vector<100x50xf32>, vector<8x50xf32> -> vector<8x50xf32>
    %c0_35 = arith.constant 0 : index
    %c0_36 = arith.constant 0 : index
    %69 = vector.load %arg10[%c0_35, %c0_36] : memref<1x50xf32, #tpu.memory_space<vmem>>, vector<1x50xf32>
    %70 = vector.broadcast %69 : vector<1x50xf32> to vector<8x50xf32>
    %71 = arith.addf %68, %70 : vector<8x50xf32>
    %cst_37 = arith.constant 0.000000e+00 : f32
    %72 = vector.broadcast %cst_37 : f32 to vector<8x50xf32>
    %73 = arith.maximumf %71, %72 : vector<8x50xf32>
    %c0_38 = arith.constant 0 : index
    %c0_39 = arith.constant 0 : index
    %74 = vector.load %arg11[%c0_38, %c0_39] : memref<1x50xf32, #tpu.memory_space<vmem>>, vector<1x50xf32>
    %c0_40 = arith.constant 0 : index
    %c0_41 = arith.constant 0 : index
    %75 = vector.load %arg12[%c0_40, %c0_41] : memref<1x50xf32, #tpu.memory_space<vmem>>, vector<1x50xf32>
    %cst_42 = arith.constant dense<0.000000e+00> : vector<50xf32>
    %76 = vector.multi_reduction <add>, %73, %cst_42 [0] : vector<8x50xf32> to vector<50xf32>
    %77 = vector.shape_cast %76 : vector<50xf32> to vector<1x50xf32>
    %cst_43 = arith.constant 8.000000e+00 : f32
    %78 = vector.broadcast %cst_43 : f32 to vector<1x50xf32>
    %79 = arith.divf %77, %78 : vector<1x50xf32>
    %80 = arith.mulf %73, %73 : vector<8x50xf32>
    %cst_44 = arith.constant dense<0.000000e+00> : vector<50xf32>
    %81 = vector.multi_reduction <add>, %80, %cst_44 [0] : vector<8x50xf32> to vector<50xf32>
    %82 = vector.shape_cast %81 : vector<50xf32> to vector<1x50xf32>
    %cst_45 = arith.constant 8.000000e+00 : f32
    %83 = vector.broadcast %cst_45 : f32 to vector<1x50xf32>
    %84 = arith.divf %82, %83 : vector<1x50xf32>
    %85 = arith.mulf %79, %79 : vector<1x50xf32>
    %86 = arith.subf %84, %85 : vector<1x50xf32>
    %cst_46 = arith.constant 0.000000e+00 : f32
    %87 = vector.broadcast %cst_46 : f32 to vector<1x50xf32>
    %88 = arith.maximumf %86, %87 : vector<1x50xf32>
    %89 = vector.broadcast %79 : vector<1x50xf32> to vector<8x50xf32>
    %90 = arith.subf %73, %89 : vector<8x50xf32>
    %cst_47 = arith.constant 9.99999974E-6 : f32
    %91 = vector.broadcast %cst_47 : f32 to vector<1x50xf32>
    %92 = arith.addf %88, %91 : vector<1x50xf32>
    %93 = math.rsqrt %92 : vector<1x50xf32>
    %94 = vector.broadcast %93 : vector<1x50xf32> to vector<8x50xf32>
    %95 = arith.mulf %90, %94 : vector<8x50xf32>
    %96 = vector.broadcast %74 : vector<1x50xf32> to vector<8x50xf32>
    %97 = arith.mulf %95, %96 : vector<8x50xf32>
    %98 = vector.broadcast %75 : vector<1x50xf32> to vector<8x50xf32>
    %99 = arith.addf %97, %98 : vector<8x50xf32>
    %c0_48 = arith.constant 0 : index
    %c0_49 = arith.constant 0 : index
    %100 = vector.load %arg13[%c0_48, %c0_49] : memref<50x10xf32, #tpu.memory_space<vmem>>, vector<50x10xf32>
    %cst_50 = arith.constant dense<0.000000e+00> : vector<8x10xf32>
    %101 = tpu.matmul %99, %100, %cst_50 {dimension_numbers = #tpu.dot_dimension_numbers<[1], [0], [0], [1], [0, 0, 1, 1], [], []>} : vector<8x50xf32>, vector<50x10xf32>, vector<8x10xf32> -> vector<8x10xf32>
    %c0_51 = arith.constant 0 : index
    %c0_52 = arith.constant 0 : index
    %102 = vector.load %arg14[%c0_51, %c0_52] : memref<1x10xf32, #tpu.memory_space<vmem>>, vector<1x10xf32>
    %103 = vector.broadcast %102 : vector<1x10xf32> to vector<8x10xf32>
    %104 = arith.addf %101, %103 : vector<8x10xf32>
    %c0_53 = arith.constant 0 : index
    %c0_54 = arith.constant 0 : index
    %105 = vector.load %arg15[%c0_53, %c0_54] : memref<8x10xf32, #tpu.memory_space<vmem>>, vector<8x10xf32>
    tpu.vector_store %arg15[%c0_53, %c0_54], %104 {strides = array<i32>} : memref<8x10xf32, #tpu.memory_space<vmem>>, vector<8x10xf32>,
    return
  }
}

</mosaic_0001>

<llo_original>
// kernel: forward.1
$region0: #{forward.1}
  #allocation0 [shape = 'u32[]', space=smem, size = 0x4, offset = 0x4, fixed_abs, tag = 'smem constant byte address 0x4 - core index']
  #allocation1 [shape = 'u32[144,128]{1,0:T(1,128)}', space=vmem, size = 0x12000, scoped, tag = 'internal scratch']
  %s0 = inlined_call_operand.vmem [shape: f32[8,784], index: 0, kind: input, shape index: {}]
  %s1 = inlined_call_operand.vmem [shape: f32[784,200], index: 1, kind: input, shape index: {}]
  %s2 = inlined_call_operand.vmem [shape: f32[1,200], index: 2, kind: input, shape index: {}]
  %s3 = inlined_call_operand.vmem [shape: f32[1,200], index: 3, kind: input, shape index: {}]
  %s4 = inlined_call_operand.vmem [shape: f32[1,200], index: 4, kind: input, shape index: {}]
  %s5 = inlined_call_operand.vmem [shape: f32[200,100], index: 5, kind: input, shape index: {}]
  %s6 = inlined_call_operand.vmem [shape: f32[1,100], index: 6, kind: input, shape index: {}]
  %s7 = inlined_call_operand.vmem [shape: f32[1,100], index: 7, kind: input, shape index: {}]
  %s8 = inlined_call_operand.vmem [shape: f32[1,100], index: 8, kind: input, shape index: {}]
  %s9 = inlined_call_operand.vmem [shape: f32[100,50], index: 9, kind: input, shape index: {}]
  %s10 = inlined_call_operand.vmem [shape: f32[1,50], index: 10, kind: input, shape index: {}]
  %s11 = inlined_call_operand.vmem [shape: f32[1,50], index: 11, kind: input, shape index: {}]
  %s12 = inlined_call_operand.vmem [shape: f32[1,50], index: 12, kind: input, shape index: {}]
  %s13 = inlined_call_operand.vmem [shape: f32[50,10], index: 13, kind: input, shape index: {}]
  %s14 = inlined_call_operand.vmem [shape: f32[1,10], index: 14, kind: input, shape index: {}]
  %s15 = inlined_call_operand.hbm [shape: f32[8,10], index: 15, kind: output, shape index: {}]
  %s16 = sld [smem:[#allocation0]]
  $region70: #{forward.1} parent=0
    _
  %s18 = ssub.s32 1, %s16
  %s19 = scalar_select 0, %s18, %s16
  $region1: #{forward.1} parent=0
    #allocation2 [shape = 'u8[4096]{0}', space=vmem, size = 0x1000, scoped, tag = 'output window, operand 0, single buffered']
    #allocation3 [shape = 's32[1]{0}', space=sflag, size = 0x4, scoped, tag = 'scoped memory for forward.1']
    %20 = vsyncpa [#allocation3], 0
    // Predicated region
    $region2: #{forward.1} parent=1 // pred_check
      _
    $region3: #{forward.1} parent=1 // pred_check_branch
      %22 = sbr.rel (0) target = $region5
    $region4: #{forward.1} parent=1 // pred_region
      _
    $region5: #{forward.1} parent=1 // pred_fallthru
      _
    // Predicated region
    $region6: #{forward.1} parent=1 // pred_check
      _
    $region7: #{forward.1} parent=1 // pred_check_branch
      %24 = sbr.rel (0) target = $region9
    $region8: #{forward.1} parent=1 // pred_region
      _
    $region9: #{forward.1} parent=1 // pred_fallthru
      _
    // Predicated region
    $region10: #{forward.1} parent=1 // pred_check
      _
    $region11: #{forward.1} parent=1 // pred_check_branch
      %26 = sbr.rel (0) target = $region13
    $region12: #{forward.1} parent=1 // pred_region
      _
    $region13: #{forward.1} parent=1 // pred_fallthru
      _
    // Predicated region
    $region14: #{forward.1} parent=1 // pred_check
      _
    $region15: #{forward.1} parent=1 // pred_check_branch
      %28 = sbr.rel (0) target = $region17
    $region16: #{forward.1} parent=1 // pred_region
      _
    $region17: #{forward.1} parent=1 // pred_fallthru
      _
    // Predicated region
    $region18: #{forward.1} parent=1 // pred_check
      _
    $region19: #{forward.1} parent=1 // pred_check_branch
      %30 = sbr.rel (0) target = $region21
    $region20: #{forward.1} parent=1 // pred_region
      _
    $region21: #{forward.1} parent=1 // pred_fallthru
      _
    // Predicated region
    $region22: #{forward.1} parent=1 // pred_check
      _
    $region23: #{forward.1} parent=1 // pred_check_branch
      %32 = sbr.rel (0) target = $region25
    $region24: #{forward.1} parent=1 // pred_region
      _
    $region25: #{forward.1} parent=1 // pred_fallthru
      _
    // Predicated region
    $region26: #{forward.1} parent=1 // pred_check
      _
    $region27: #{forward.1} parent=1 // pred_check_branch
      %34 = sbr.rel (0) target = $region29
    $region28: #{forward.1} parent=1 // pred_region
      _
    $region29: #{forward.1} parent=1 // pred_fallthru
      _
    // Predicated region
    $region30: #{forward.1} parent=1 // pred_check
      _
    $region31: #{forward.1} parent=1 // pred_check_branch
      %36 = sbr.rel (0) target = $region33
    $region32: #{forward.1} parent=1 // pred_region
      _
    $region33: #{forward.1} parent=1 // pred_fallthru
      _
    // Predicated region
    $region34: #{forward.1} parent=1 // pred_check
      _
    $region35: #{forward.1} parent=1 // pred_check_branch
      %38 = sbr.rel (0) target = $region37
    $region36: #{forward.1} parent=1 // pred_region
      _
    $region37: #{forward.1} parent=1 // pred_fallthru
      _
    // Predicated region
    $region38: #{forward.1} parent=1 // pred_check
      _
    $region39: #{forward.1} parent=1 // pred_check_branch
      %40 = sbr.rel (0) target = $region41
    $region40: #{forward.1} parent=1 // pred_region
      _
    $region41: #{forward.1} parent=1 // pred_fallthru
      _
    // Predicated region
    $region42: #{forward.1} parent=1 // pred_check
      _
    $region43: #{forward.1} parent=1 // pred_check_branch
      %42 = sbr.rel (0) target = $region45
    $region44: #{forward.1} parent=1 // pred_region
      _
    $region45: #{forward.1} parent=1 // pred_fallthru
      _
    // Predicated region
    $region46: #{forward.1} parent=1 // pred_check
      _
    $region47: #{forward.1} parent=1 // pred_check_branch
      %44 = sbr.rel (0) target = $region49
    $region48: #{forward.1} parent=1 // pred_region
      _
    $region49: #{forward.1} parent=1 // pred_fallthru
      _
    // Predicated region
    $region50: #{forward.1} parent=1 // pred_check
      _
    $region51: #{forward.1} parent=1 // pred_check_branch
      %46 = sbr.rel (0) target = $region53
    $region52: #{forward.1} parent=1 // pred_region
      _
    $region53: #{forward.1} parent=1 // pred_fallthru
      _
    // Predicated region
    $region54: #{forward.1} parent=1 // pred_check
      _
    $region55: #{forward.1} parent=1 // pred_check_branch
      %48 = sbr.rel (0) target = $region57
    $region56: #{forward.1} parent=1 // pred_region
      _
    $region57: #{forward.1} parent=1 // pred_fallthru
      _
    // Predicated region
    $region58: #{forward.1} parent=1 // pred_check
      _
    $region59: #{forward.1} parent=1 // pred_check_branch
      %50 = sbr.rel (0) target = $region61
    $region60: #{forward.1} parent=1 // pred_region
      _
    $region61: #{forward.1} parent=1 // pred_fallthru
      _
    %v51 = vld [vmem:[%s0] sm:$0xff]
    %v52 = vld [vmem:[%s0 + $0x8] sm:$0xff]
    %v53 = vld [vmem:[%s0 + $0x10] sm:$0xff]
    %v54 = vld [vmem:[%s0 + $0x18] sm:$0xff]
    %v55 = vld [vmem:[%s0 + $0x20] sm:$0xff]
    %v56 = vld [vmem:[%s0 + $0x28] sm:$0xff]
    %v57 = vld [vmem:[%s0 + $0x30] sm:$0xff]
    %v58 = vld [vmem:[%s1] sm:$0xff]
    %v59 = vld [vmem:[%s1 + $0x8] sm:$0xff]
    %v60 = vld [vmem:[%s1 + $0x10] sm:$0xff]
    %v61 = vld [vmem:[%s1 + $0x18] sm:$0xff]
    %v62 = vld [vmem:[%s1 + $0x20] sm:$0xff]
    %v63 = vld [vmem:[%s1 + $0x28] sm:$0xff]
    %v64 = vld [vmem:[%s1 + $0x30] sm:$0xff]
    %v65 = vld [vmem:[%s1 + $0x38] sm:$0xff]
    %v66 = vld [vmem:[%s1 + $0x40] sm:$0xff]
    %v67 = vld [vmem:[%s1 + $0x48] sm:$0xff]
    %v68 = vld [vmem:[%s1 + $0x50] sm:$0xff]
    %v69 = vld [vmem:[%s1 + $0x58] sm:$0xff]
    %v70 = vld [vmem:[%s1 + $0x60] sm:$0xff]
    %v71 = vld [vmem:[%s1 + $0x68] sm:$0xff]
    %v72 = vld [vmem:[%s1 + $0x70] sm:$0xff]
    %v73 = vld [vmem:[%s1 + $0x78] sm:$0xff]
    %v74 = vld [vmem:[%s1 + $0x80] sm:$0xff]
    %v75 = vld [vmem:[%s1 + $0x88] sm:$0xff]
    %v76 = vld [vmem:[%s1 + $0x90] sm:$0xff]
    %v77 = vld [vmem:[%s1 + $0x98] sm:$0xff]
    %v78 = vld [vmem:[%s1 + $0xa0] sm:$0xff]
    %v79 = vld [vmem:[%s1 + $0xa8] sm:$0xff]
    %v80 = vld [vmem:[%s1 + $0xb0] sm:$0xff]
    %v81 = vld [vmem:[%s1 + $0xb8] sm:$0xff]
    %v82 = vld [vmem:[%s1 + $0xc0] sm:$0xff]
    %v83 = vld [vmem:[%s1 + $0xc8] sm:$0xff]
    %v84 = vld [vmem:[%s1 + $0xd0] sm:$0xff]
    %v85 = vld [vmem:[%s1 + $0xd8] sm:$0xff]
    %v86 = vld [vmem:[%s1 + $0xe0] sm:$0xff]
    %v87 = vld [vmem:[%s1 + $0xe8] sm:$0xff]
    %v88 = vld [vmem:[%s1 + $0xf0] sm:$0xff]
    %v89 = vld [vmem:[%s1 + $0xf8] sm:$0xff]
    %v90 = vld [vmem:[%s1 + $0x100] sm:$0xff]
    %v91 = vld [vmem:[%s1 + $0x108] sm:$0xff]
    %v92 = vld [vmem:[%s1 + $0x110] sm:$0xff]
    %v93 = vld [vmem:[%s1 + $0x118] sm:$0xff]
    %v94 = vld [vmem:[%s1 + $0x120] sm:$0xff]
    %v95 = vld [vmem:[%s1 + $0x128] sm:$0xff]
    %v96 = vld [vmem:[%s1 + $0x130] sm:$0xff]
    %v97 = vld [vmem:[%s1 + $0x138] sm:$0xff]
    %v98 = vld [vmem:[%s1 + $0x140] sm:$0xff]
    %v99 = vld [vmem:[%s1 + $0x148] sm:$0xff]
    %v100 = vld [vmem:[%s1 + $0x150] sm:$0xff]
    %v101 = vld [vmem:[%s1 + $0x158] sm:$0xff]
    %v102 = vld [vmem:[%s1 + $0x160] sm:$0xff]
    %v103 = vld [vmem:[%s1 + $0x168] sm:$0xff]
    %v104 = vld [vmem:[%s1 + $0x170] sm:$0xff]
    %v105 = vld [vmem:[%s1 + $0x178] sm:$0xff]
    %v106 = vld [vmem:[%s1 + $0x180] sm:$0xff]
    %v107 = vld [vmem:[%s1 + $0x188] sm:$0xff]
    %v108 = vld [vmem:[%s1 + $0x190] sm:$0xff]
    %v109 = vld [vmem:[%s1 + $0x198] sm:$0xff]
    %v110 = vld [vmem:[%s1 + $0x1a0] sm:$0xff]
    %v111 = vld [vmem:[%s1 + $0x1a8] sm:$0xff]
    %v112 = vld [vmem:[%s1 + $0x1b0] sm:$0xff]
    %v113 = vld [vmem:[%s1 + $0x1b8] sm:$0xff]
    %v114 = vld [vmem:[%s1 + $0x1c0] sm:$0xff]
    %v115 = vld [vmem:[%s1 + $0x1c8] sm:$0xff]
    %v116 = vld [vmem:[%s1 + $0x1d0] sm:$0xff]
    %v117 = vld [vmem:[%s1 + $0x1d8] sm:$0xff]
    %v118 = vld [vmem:[%s1 + $0x1e0] sm:$0xff]
    %v119 = vld [vmem:[%s1 + $0x1e8] sm:$0xff]
    %v120 = vld [vmem:[%s1 + $0x1f0] sm:$0xff]
    %v121 = vld [vmem:[%s1 + $0x1f8] sm:$0xff]
    %v122 = vld [vmem:[%s1 + $0x200] sm:$0xff]
    %v123 = vld [vmem:[%s1 + $0x208] sm:$0xff]
    %v124 = vld [vmem:[%s1 + $0x210] sm:$0xff]
    %v125 = vld [vmem:[%s1 + $0x218] sm:$0xff]
    %v126 = vld [vmem:[%s1 + $0x220] sm:$0xff]
    %v127 = vld [vmem:[%s1 + $0x228] sm:$0xff]
    %v128 = vld [vmem:[%s1 + $0x230] sm:$0xff]
    %v129 = vld [vmem:[%s1 + $0x238] sm:$0xff]
    %v130 = vld [vmem:[%s1 + $0x240] sm:$0xff]
    %v131 = vld [vmem:[%s1 + $0x248] sm:$0xff]
    %v132 = vld [vmem:[%s1 + $0x250] sm:$0xff]
    %v133 = vld [vmem:[%s1 + $0x258] sm:$0xff]
    %v134 = vld [vmem:[%s1 + $0x260] sm:$0xff]
    %v135 = vld [vmem:[%s1 + $0x268] sm:$0xff]
    %v136 = vld [vmem:[%s1 + $0x270] sm:$0xff]
    %v137 = vld [vmem:[%s1 + $0x278] sm:$0xff]
    %v138 = vld [vmem:[%s1 + $0x280] sm:$0xff]
    %v139 = vld [vmem:[%s1 + $0x288] sm:$0xff]
    %v140 = vld [vmem:[%s1 + $0x290] sm:$0xff]
    %v141 = vld [vmem:[%s1 + $0x298] sm:$0xff]
    %v142 = vld [vmem:[%s1 + $0x2a0] sm:$0xff]
    %v143 = vld [vmem:[%s1 + $0x2a8] sm:$0xff]
    %v144 = vld [vmem:[%s1 + $0x2b0] sm:$0xff]
    %v145 = vld [vmem:[%s1 + $0x2b8] sm:$0xff]
    %v146 = vld [vmem:[%s1 + $0x2c0] sm:$0xff]
    %v147 = vld [vmem:[%s1 + $0x2c8] sm:$0xff]
    %v148 = vld [vmem:[%s1 + $0x2d0] sm:$0xff]
    %v149 = vld [vmem:[%s1 + $0x2d8] sm:$0xff]
    %v150 = vld [vmem:[%s1 + $0x2e0] sm:$0xff]
    %v151 = vld [vmem:[%s1 + $0x2e8] sm:$0xff]
    %v152 = vld [vmem:[%s1 + $0x2f0] sm:$0xff]
    %v153 = vld [vmem:[%s1 + $0x2f8] sm:$0xff]
    %v154 = vld [vmem:[%s1 + $0x300] sm:$0xff]
    %v155 = vld [vmem:[%s1 + $0x308] sm:$0xff]
    %v156 = vld [vmem:[%s1 + $0x310] sm:$0xff]
    %v157 = vld [vmem:[%s1 + $0x318] sm:$0xff]
    %v158 = vld [vmem:[%s1 + $0x320] sm:$0xff]
    %v159 = vld [vmem:[%s1 + $0x328] sm:$0xff]
    %v160 = vld [vmem:[%s1 + $0x330] sm:$0xff]
    %v161 = vld [vmem:[%s1 + $0x338] sm:$0xff]
    %v162 = vld [vmem:[%s1 + $0x340] sm:$0xff]
    %v163 = vld [vmem:[%s1 + $0x348] sm:$0xff]
    %v164 = vld [vmem:[%s1 + $0x350] sm:$0xff]
    %v165 = vld [vmem:[%s1 + $0x358] sm:$0xff]
    %v166 = vld [vmem:[%s1 + $0x360] sm:$0xff]
    %v167 = vld [vmem:[%s1 + $0x368] sm:$0xff]
    %v168 = vld [vmem:[%s1 + $0x370] sm:$0xff]
    %v169 = vld [vmem:[%s1 + $0x378] sm:$0xff]
    %v170 = vld [vmem:[%s1 + $0x380] sm:$0xff]
    %v171 = vld [vmem:[%s1 + $0x388] sm:$0xff]
    %v172 = vld [vmem:[%s1 + $0x390] sm:$0xff]
    %v173 = vld [vmem:[%s1 + $0x398] sm:$0xff]
    %v174 = vld [vmem:[%s1 + $0x3a0] sm:$0xff]
    %v175 = vld [vmem:[%s1 + $0x3a8] sm:$0xff]
    %v176 = vld [vmem:[%s1 + $0x3b0] sm:$0xff]
    %v177 = vld [vmem:[%s1 + $0x3b8] sm:$0xff]
    %v178 = vld [vmem:[%s1 + $0x3c0] sm:$0xff]
    %v179 = vld [vmem:[%s1 + $0x3c8] sm:$0xff]
    %v180 = vld [vmem:[%s1 + $0x3d0] sm:$0xff]
    %v181 = vld [vmem:[%s1 + $0x3d8] sm:$0xff]
    %v182 = vld [vmem:[%s1 + $0x3e0] sm:$0xff]
    %v183 = vld [vmem:[%s1 + $0x3e8] sm:$0xff]
    %v184 = vld [vmem:[%s1 + $0x3f0] sm:$0xff]
    %v185 = vld [vmem:[%s1 + $0x3f8] sm:$0xff]
    %v186 = vld [vmem:[%s1 + $0x400] sm:$0xff]
    %v187 = vld [vmem:[%s1 + $0x408] sm:$0xff]
    %v188 = vld [vmem:[%s1 + $0x410] sm:$0xff]
    %v189 = vld [vmem:[%s1 + $0x418] sm:$0xff]
    %v190 = vld [vmem:[%s1 + $0x420] sm:$0xff]
    %v191 = vld [vmem:[%s1 + $0x428] sm:$0xff]
    %v192 = vld [vmem:[%s1 + $0x430] sm:$0xff]
    %v193 = vld [vmem:[%s1 + $0x438] sm:$0xff]
    %v194 = vld [vmem:[%s1 + $0x440] sm:$0xff]
    %v195 = vld [vmem:[%s1 + $0x448] sm:$0xff]
    %v196 = vld [vmem:[%s1 + $0x450] sm:$0xff]
    %v197 = vld [vmem:[%s1 + $0x458] sm:$0xff]
    %v198 = vld [vmem:[%s1 + $0x460] sm:$0xff]
    %v199 = vld [vmem:[%s1 + $0x468] sm:$0xff]
    %v200 = vld [vmem:[%s1 + $0x470] sm:$0xff]
    %v201 = vld [vmem:[%s1 + $0x478] sm:$0xff]
    %v202 = vld [vmem:[%s1 + $0x480] sm:$0xff]
    %v203 = vld [vmem:[%s1 + $0x488] sm:$0xff]
    %v204 = vld [vmem:[%s1 + $0x490] sm:$0xff]
    %v205 = vld [vmem:[%s1 + $0x498] sm:$0xff]
    %v206 = vld [vmem:[%s1 + $0x4a0] sm:$0xff]
    %v207 = vld [vmem:[%s1 + $0x4a8] sm:$0xff]
    %v208 = vld [vmem:[%s1 + $0x4b0] sm:$0xff]
    %v209 = vld [vmem:[%s1 + $0x4b8] sm:$0xff]
    %v210 = vld [vmem:[%s1 + $0x4c0] sm:$0xff]
    %v211 = vld [vmem:[%s1 + $0x4c8] sm:$0xff]
    %v212 = vld [vmem:[%s1 + $0x4d0] sm:$0xff]
    %v213 = vld [vmem:[%s1 + $0x4d8] sm:$0xff]
    %v214 = vld [vmem:[%s1 + $0x4e0] sm:$0xff]
    %v215 = vld [vmem:[%s1 + $0x4e8] sm:$0xff]
    %v216 = vld [vmem:[%s1 + $0x4f0] sm:$0xff]
    %v217 = vld [vmem:[%s1 + $0x4f8] sm:$0xff]
    %v218 = vld [vmem:[%s1 + $0x500] sm:$0xff]
    %v219 = vld [vmem:[%s1 + $0x508] sm:$0xff]
    %v220 = vld [vmem:[%s1 + $0x510] sm:$0xff]
    %v221 = vld [vmem:[%s1 + $0x518] sm:$0xff]
    %v222 = vld [vmem:[%s1 + $0x520] sm:$0xff]
    %v223 = vld [vmem:[%s1 + $0x528] sm:$0xff]
    %v224 = vld [vmem:[%s1 + $0x530] sm:$0xff]
    %v225 = vld [vmem:[%s1 + $0x538] sm:$0xff]
    %v226 = vld [vmem:[%s1 + $0x540] sm:$0xff]
    %v227 = vld [vmem:[%s1 + $0x548] sm:$0xff]
    %v228 = vld [vmem:[%s1 + $0x550] sm:$0xff]
    %v229 = vld [vmem:[%s1 + $0x558] sm:$0xff]
    %v230 = vld [vmem:[%s1 + $0x560] sm:$0xff]
    %v231 = vld [vmem:[%s1 + $0x568] sm:$0xff]
    %v232 = vld [vmem:[%s1 + $0x570] sm:$0xff]
    %v233 = vld [vmem:[%s1 + $0x578] sm:$0xff]
    %v234 = vld [vmem:[%s1 + $0x580] sm:$0xff]
    %v235 = vld [vmem:[%s1 + $0x588] sm:$0xff]
    %v236 = vld [vmem:[%s1 + $0x590] sm:$0xff]
    %v237 = vld [vmem:[%s1 + $0x598] sm:$0xff]
    %v238 = vld [vmem:[%s1 + $0x5a0] sm:$0xff]
    %v239 = vld [vmem:[%s1 + $0x5a8] sm:$0xff]
    %v240 = vld [vmem:[%s1 + $0x5b0] sm:$0xff]
    %v241 = vld [vmem:[%s1 + $0x5b8] sm:$0xff]
    %v242 = vld [vmem:[%s1 + $0x5c0] sm:$0xff]
    %v243 = vld [vmem:[%s1 + $0x5c8] sm:$0xff]
    %v244 = vld [vmem:[%s1 + $0x5d0] sm:$0xff]
    %v245 = vld [vmem:[%s1 + $0x5d8] sm:$0xff]
    %v246 = vld [vmem:[%s1 + $0x5e0] sm:$0xff]
    %v247 = vld [vmem:[%s1 + $0x5e8] sm:$0xff]
    %v248 = vld [vmem:[%s1 + $0x5f0] sm:$0xff]
    %v249 = vld [vmem:[%s1 + $0x5f8] sm:$0xff]
    %v250 = vld [vmem:[%s1 + $0x600] sm:$0xff]
    %v251 = vld [vmem:[%s1 + $0x608] sm:$0xff]
    %v252 = vld [vmem:[%s1 + $0x610] sm:$0xff]
    %v253 = vld [vmem:[%s1 + $0x618] sm:$0xff]
    %v254 = vld [vmem:[%s2] sm:$0x3]
    %v256 = vlaneseq
    %v257 = vshrl.u32 %v256, 7
    %v258 = vsub.s32 0, %v257
    %v259 = vrot.slane %v254, %v258
    %v260 = vlaneseq
    %v261 = vshrl.u32 %v260, 7
    %v262 = vsub.s32 1, %v261
    %v263 = vrot.slane %v254, %v262
    %vm266 = vcmask 130048
    %v268 = vsel %vm266, %v57, 0
    %270 = vmatprep.subr.mxu0 %v59
    %271 = vmatpush1.msra.mxu0 %v58
    %272 = vmatprep.subr.mxu0 %v61
    %273 = vmatpush1.msra.mxu0 %v60
    %274 = vmatprep.subr.mxu0 %v63
    %275 = vmatpush1.msra.mxu0 %v62
    %276 = vmatprep.subr.mxu0 %v65
    %277 = vmatpush1.msra.mxu0 %v64
    %278 = vmatprep.subr.mxu0 %v67
    %279 = vmatpush1.msra.mxu0 %v66
    %280 = vmatprep.subr.mxu0 %v69
    %281 = vmatpush1.msra.mxu0 %v68
    %282 = vmatprep.subr.mxu0 %v71
    %283 = vmatpush1.msra.mxu0 %v70
    %284 = vmatprep.subr.mxu0 %v73
    %285 = vmatpush1.msra.mxu0 %v72
    %286 = vmatprep.subr.mxu0 %v75
    %287 = vmatpush1.msra.mxu0 %v74
    %288 = vmatprep.subr.mxu0 %v77
    %289 = vmatpush1.msra.mxu0 %v76
    %290 = vmatprep.subr.mxu0 %v79
    %291 = vmatpush1.msra.mxu0 %v78
    %292 = vmatprep.subr.mxu0 %v81
    %293 = vmatpush1.msra.mxu0 %v80
    %294 = vmatprep.subr.mxu0 %v83
    %295 = vmatpush1.msra.mxu0 %v82
    %296 = vmatprep.subr.mxu0 %v85
    %297 = vmatpush1.msra.mxu0 %v84
    %298 = vmatprep.subr.mxu0 %v87
    %299 = vmatpush1.msra.mxu0 %v86
    %300 = vmatprep.subr.mxu0 %v89
    %301 = vmatpush1.msra.mxu0 %v88
    %302 = vmatprep.subr.mxu0 %v91
    %303 = vmatpush1.msra.mxu0 %v90
    %304 = vmatprep.subr.mxu0 %v93
    %305 = vmatpush1.msra.mxu0 %v92
    %306 = vmatprep.subr.mxu0 %v95
    %307 = vmatpush1.msra.mxu0 %v94
    %308 = vmatprep.subr.mxu0 %v97
    %309 = vmatpush1.msra.mxu0 %v96
    %310 = vmatprep.subr.mxu0 %v99
    %311 = vmatpush1.msra.mxu0 %v98
    %312 = vmatprep.subr.mxu0 %v101
    %313 = vmatpush1.msra.mxu0 %v100
    %314 = vmatprep.subr.mxu0 %v103
    %315 = vmatpush1.msra.mxu0 %v102
    %316 = vmatprep.subr.mxu0 %v105
    %317 = vmatpush1.msra.mxu0 %v104
    %318 = vmatprep.subr.mxu0 %v107
    %319 = vmatpush1.msra.mxu0 %v106
    %320 = vmatprep.subr.mxu0 %v109
    %321 = vmatpush1.msra.mxu0 %v108
    %322 = vmatprep.subr.mxu0 %v111
    %323 = vmatpush1.msra.mxu0 %v110
    %324 = vmatprep.subr.mxu0 %v113
    %325 = vmatpush1.msra.mxu0 %v112
    %326 = vmatprep.subr.mxu0 %v115
    %327 = vmatpush1.msra.mxu0 %v114
    %328 = vmatprep.subr.mxu0 %v117
    %329 = vmatpush1.msra.mxu0 %v116
    %330 = vmatprep.subr.mxu0 %v119
    %331 = vmatpush1.msra.mxu0 %v118
    %332 = vmatprep.subr.mxu0 %v121
    %333 = vmatpush1.msra.mxu0 %v120
    %334 = vmatprep.mubr.f32.mxu0 %v52
    %335 = vmatmul.mubr.f32.gmra.mrb[0].mxu0 %v51
    %v336 = vpop.f32.mrb[0].mxu0
    %v337 = vadd.f32 %v259, %v336
    %v338 = vpop.f32.mrb[0].mxu0
    %v339 = vadd.f32 %v263, %v338
    %340 = vdwg.mxu0
    %341 = vmatprep.subr.mxu0 %v123
    %342 = vmatpush1.msra.mxu0 %v122
    %343 = vmatprep.subr.mxu0 %v125
    %344 = vmatpush1.msra.mxu0 %v124
    %345 = vmatprep.subr.mxu0 %v127
    %346 = vmatpush1.msra.mxu0 %v126
    %347 = vmatprep.subr.mxu0 %v129
    %348 = vmatpush1.msra.mxu0 %v128
    %349 = vmatprep.subr.mxu0 %v131
    %350 = vmatpush1.msra.mxu0 %v130
    %351 = vmatprep.subr.mxu0 %v133
    %352 = vmatpush1.msra.mxu0 %v132
    %353 = vmatprep.subr.mxu0 %v135
    %354 = vmatpush1.msra.mxu0 %v134
    %355 = vmatprep.subr.mxu0 %v137
    %356 = vmatpush1.msra.mxu0 %v136
    %357 = vmatprep.subr.mxu0 %v139
    %358 = vmatpush1.msra.mxu0 %v138
    %359 = vmatprep.subr.mxu0 %v141
    %360 = vmatpush1.msra.mxu0 %v140
    %361 = vmatprep.subr.mxu0 %v143
    %362 = vmatpush1.msra.mxu0 %v142
    %363 = vmatprep.subr.mxu0 %v145
    %364 = vmatpush1.msra.mxu0 %v144
    %365 = vmatprep.subr.mxu0 %v147
    %366 = vmatpush1.msra.mxu0 %v146
    %367 = vmatprep.subr.mxu0 %v149
    %368 = vmatpush1.msra.mxu0 %v148
    %369 = vmatprep.subr.mxu0 %v151
    %370 = vmatpush1.msra.mxu0 %v150
    %371 = vmatprep.subr.mxu0 %v153
    %372 = vmatpush1.msra.mxu0 %v152
    %373 = vmatprep.subr.mxu0 %v155
    %374 = vmatpush1.msra.mxu0 %v154
    %375 = vmatprep.subr.mxu0 %v157
    %376 = vmatpush1.msra.mxu0 %v156
    %377 = vmatprep.subr.mxu0 %v159
    %378 = vmatpush1.msra.mxu0 %v158
    %379 = vmatprep.subr.mxu0 %v161
    %380 = vmatpush1.msra.mxu0 %v160
    %381 = vmatprep.subr.mxu0 %v163
    %382 = vmatpush1.msra.mxu0 %v162
    %383 = vmatprep.subr.mxu0 %v165
    %384 = vmatpush1.msra.mxu0 %v164
    %385 = vmatprep.subr.mxu0 %v167
    %386 = vmatpush1.msra.mxu0 %v166
    %387 = vmatprep.subr.mxu0 %v169
    %388 = vmatpush1.msra.mxu0 %v168
    %389 = vmatprep.subr.mxu0 %v171
    %390 = vmatpush1.msra.mxu0 %v170
    %391 = vmatprep.subr.mxu0 %v173
    %392 = vmatpush1.msra.mxu0 %v172
    %393 = vmatprep.subr.mxu0 %v175
    %394 = vmatpush1.msra.mxu0 %v174
    %395 = vmatprep.subr.mxu0 %v177
    %396 = vmatpush1.msra.mxu0 %v176
    %397 = vmatprep.subr.mxu0 %v179
    %398 = vmatpush1.msra.mxu0 %v178
    %399 = vmatprep.subr.mxu0 %v181
    %400 = vmatpush1.msra.mxu0 %v180
    %401 = vmatprep.subr.mxu0 %v183
    %402 = vmatpush1.msra.mxu0 %v182
    %403 = vmatprep.subr.mxu0 %v185
    %404 = vmatpush1.msra.mxu0 %v184
    %405 = vmatprep.mubr.f32.mxu0 %v54
    %406 = vmatmul.mubr.f32.gmra.mrb[0].mxu0 %v53
    %v407 = vpop.f32.mrb[0].mxu0
    %v408 = vadd.f32 %v337, %v407
    %v409 = vpop.f32.mrb[0].mxu0
    %v410 = vadd.f32 %v339, %v409
    %411 = vdwg.mxu0
    %412 = vmatprep.subr.mxu0 %v187
    %413 = vmatpush1.msra.mxu0 %v186
    %414 = vmatprep.subr.mxu0 %v189
    %415 = vmatpush1.msra.mxu0 %v188
    %416 = vmatprep.subr.mxu0 %v191
    %417 = vmatpush1.msra.mxu0 %v190
    %418 = vmatprep.subr.mxu0 %v193
    %419 = vmatpush1.msra.mxu0 %v192
    %420 = vmatprep.subr.mxu0 %v195
    %421 = vmatpush1.msra.mxu0 %v194
    %422 = vmatprep.subr.mxu0 %v197
    %423 = vmatpush1.msra.mxu0 %v196
    %424 = vmatprep.subr.mxu0 %v199
    %425 = vmatpush1.msra.mxu0 %v198
    %426 = vmatprep.subr.mxu0 %v201
    %427 = vmatpush1.msra.mxu0 %v200
    %428 = vmatprep.subr.mxu0 %v203
    %429 = vmatpush1.msra.mxu0 %v202
    %430 = vmatprep.subr.mxu0 %v205
    %431 = vmatpush1.msra.mxu0 %v204
    %432 = vmatprep.subr.mxu0 %v207
    %433 = vmatpush1.msra.mxu0 %v206
    %434 = vmatprep.subr.mxu0 %v209
    %435 = vmatpush1.msra.mxu0 %v208
    %436 = vmatprep.subr.mxu0 %v211
    %437 = vmatpush1.msra.mxu0 %v210
    %438 = vmatprep.subr.mxu0 %v213
    %439 = vmatpush1.msra.mxu0 %v212
    %440 = vmatprep.subr.mxu0 %v215
    %441 = vmatpush1.msra.mxu0 %v214
    %442 = vmatprep.subr.mxu0 %v217
    %443 = vmatpush1.msra.mxu0 %v216
    %444 = vmatprep.subr.mxu0 %v219
    %445 = vmatpush1.msra.mxu0 %v218
    %446 = vmatprep.subr.mxu0 %v221
    %447 = vmatpush1.msra.mxu0 %v220
    %448 = vmatprep.subr.mxu0 %v223
    %449 = vmatpush1.msra.mxu0 %v222
    %450 = vmatprep.subr.mxu0 %v225
    %451 = vmatpush1.msra.mxu0 %v224
    %452 = vmatprep.subr.mxu0 %v227
    %453 = vmatpush1.msra.mxu0 %v226
    %454 = vmatprep.subr.mxu0 %v229
    %455 = vmatpush1.msra.mxu0 %v228
    %456 = vmatprep.subr.mxu0 %v231
    %457 = vmatpush1.msra.mxu0 %v230
    %458 = vmatprep.subr.mxu0 %v233
    %459 = vmatpush1.msra.mxu0 %v232
    %460 = vmatprep.subr.mxu0 %v235
    %461 = vmatpush1.msra.mxu0 %v234
    %462 = vmatprep.subr.mxu0 %v237
    %463 = vmatpush1.msra.mxu0 %v236
    %464 = vmatprep.subr.mxu0 %v239
    %465 = vmatpush1.msra.mxu0 %v238
    %466 = vmatprep.subr.mxu0 %v241
    %467 = vmatpush1.msra.mxu0 %v240
    %468 = vmatprep.subr.mxu0 %v243
    %469 = vmatpush1.msra.mxu0 %v242
    %470 = vmatprep.subr.mxu0 %v245
    %471 = vmatpush1.msra.mxu0 %v244
    %472 = vmatprep.subr.mxu0 %v247
    %473 = vmatpush1.msra.mxu0 %v246
    %474 = vmatprep.subr.mxu0 %v249
    %475 = vmatpush1.msra.mxu0 %v248
    %476 = vmatprep.mubr.f32.mxu0 %v56
    %477 = vmatmul.mubr.f32.gmra.mrb[0].mxu0 %v55
    %v478 = vpop.f32.mrb[0].mxu0
    %v479 = vadd.f32 %v408, %v478
    %v480 = vpop.f32.mrb[0].mxu0
    %v481 = vadd.f32 %v410, %v480
    %482 = vdwg.mxu0
    %483 = vmatprep.subr.mxu0 %v251
    %484 = vmatpush1.msra.mxu0 %v250
    %485 = vmatprep.subr.mxu0 %v253
    %486 = vmatpush1.msra.mxu0 %v252
    %487 = vmatprep.subr.mxu0 0.0
    %488 = vmatpush1.msra.mxu0 0.0
    %489 = vmatprep.subr.mxu0 0.0
    %490 = vmatpush1.msra.mxu0 0.0
    %491 = vmatprep.subr.mxu0 0.0
    %492 = vmatpush1.msra.mxu0 0.0
    %493 = vmatprep.subr.mxu0 0.0
    %494 = vmatpush1.msra.mxu0 0.0
    %495 = vmatprep.subr.mxu0 0.0
    %496 = vmatpush1.msra.mxu0 0.0
    %497 = vmatprep.subr.mxu0 0.0
    %498 = vmatpush1.msra.mxu0 0.0
    %499 = vmatprep.subr.mxu0 0.0
    %500 = vmatpush1.msra.mxu0 0.0
    %501 = vmatprep.subr.mxu0 0.0
    %502 = vmatpush1.msra.mxu0 0.0
    %503 = vmatprep.subr.mxu0 0.0
    %504 = vmatpush1.msra.mxu0 0.0
    %505 = vmatprep.subr.mxu0 0.0
    %506 = vmatpush1.msra.mxu0 0.0
    %507 = vmatprep.subr.mxu0 0.0
    %508 = vmatpush1.msra.mxu0 0.0
    %509 = vmatprep.subr.mxu0 0.0
    %510 = vmatpush1.msra.mxu0 0.0
    %511 = vmatprep.subr.mxu0 0.0
    %512 = vmatpush1.msra.mxu0 0.0
    %513 = vmatprep.subr.mxu0 0.0
    %514 = vmatpush1.msra.mxu0 0.0
    %515 = vmatprep.subr.mxu0 0.0
    %516 = vmatpush1.msra.mxu0 0.0
    %517 = vmatprep.subr.mxu0 0.0
    %518 = vmatpush1.msra.mxu0 0.0
    %519 = vmatprep.subr.mxu0 0.0
    %520 = vmatpush1.msra.mxu0 0.0
    %521 = vmatprep.subr.mxu0 0.0
    %522 = vmatpush1.msra.mxu0 0.0
    %523 = vmatprep.subr.mxu0 0.0
    %524 = vmatpush1.msra.mxu0 0.0
    %525 = vmatprep.subr.mxu0 0.0
    %526 = vmatpush1.msra.mxu0 0.0
    %527 = vmatprep.subr.mxu0 0.0
    %528 = vmatpush1.msra.mxu0 0.0
    %529 = vmatprep.subr.mxu0 0.0
    %530 = vmatpush1.msra.mxu0 0.0
    %531 = vmatprep.subr.mxu0 0.0
    %532 = vmatpush1.msra.mxu0 0.0
    %533 = vmatprep.subr.mxu0 0.0
    %534 = vmatpush1.msra.mxu0 0.0
    %535 = vmatprep.subr.mxu0 0.0
    %536 = vmatpush1.msra.mxu0 0.0
    %537 = vmatprep.subr.mxu0 0.0
    %538 = vmatpush1.msra.mxu0 0.0
    %539 = vmatprep.subr.mxu0 0.0
    %540 = vmatpush1.msra.mxu0 0.0
    %541 = vmatprep.subr.mxu0 0.0
    %542 = vmatpush1.msra.mxu0 0.0
    %543 = vmatprep.subr.mxu0 0.0
    %544 = vmatpush1.msra.mxu0 0.0
    %545 = vmatprep.subr.mxu0 0.0
    %546 = vmatpush1.msra.mxu0 0.0
    %547 = vmatprep.mubr.f32.mxu0 0.0
    %548 = vmatmul.mubr.f32.gmra.mrb[0].mxu0 %v268
    %v549 = vpop.f32.mrb[0].mxu0
    %v550 = vadd.f32 %v479, %v549
    %v551 = vpop.f32.mrb[0].mxu0
    %v552 = vadd.f32 %v481, %v551
    %553 = vdwg.mxu0
    %v554 = vmax.f32 %v550, 0.0
    %v555 = vmax.f32 %v552, 0.0
    %v556 = vld [vmem:[%s3] sm:$0x3]
    %v557 = vld [vmem:[%s4] sm:$0x3]
    %v558 = vrot.slane %v554, 4
    %v559 = vadd.f32 %v554, %v558
    %v560 = vrot.slane %v559, 2
    %v561 = vadd.f32 %v559, %v560
    %v562 = vrot.slane %v561, 1
    %v563 = vadd.f32 %v561, %v562
    %vm564 = vcmask 588800
    %v565 = vsel %vm564, %v555, 0.0
    %v566 = vrot.slane %v565, 4
    %v567 = vadd.f32 %v565, %v566
    %v568 = vrot.slane %v567, 2
    %v569 = vadd.f32 %v567, %v568
    %v570 = vrot.slane %v569, 1
    %v571 = vadd.f32 %v569, %v570
    %v572 = vrcp.pop 8.0
    %v573 = vmul.f32 %v563, %v572
    %v574 = vmul.f32 %v571, %v572
    %v575 = vmul.f32 %v554, %v554
    %v576 = vmul.f32 %v555, %v555
    %v577 = vrot.slane %v575, 4
    %v578 = vadd.f32 %v575, %v577
    %v579 = vrot.slane %v578, 2
    %v580 = vadd.f32 %v578, %v579
    %v581 = vrot.slane %v580, 1
    %v582 = vadd.f32 %v580, %v581
    %v583 = vsel %vm564, %v576, 0.0
    %v584 = vrot.slane %v583, 4
    %v585 = vadd.f32 %v583, %v584
    %v586 = vrot.slane %v585, 2
    %v587 = vadd.f32 %v585, %v586
    %v588 = vrot.slane %v587, 1
    %v589 = vadd.f32 %v587, %v588
    %v590 = vmul.f32 %v582, %v572
    %v591 = vmul.f32 %v589, %v572
    %v592 = vmul.f32 %v573, %v573
    %v593 = vmul.f32 %v574, %v574
    %v594 = vsub.f32 %v590, %v592
    %v595 = vsub.f32 %v591, %v593
    %v596 = vmax.f32 %v594, 0.0
    %v597 = vmax.f32 %v595, 0.0
    %v598 = vsub.f32 %v554, %v573
    %v599 = vsub.f32 %v555, %v574
    %v600 = vadd.f32 %v596, 1e-05
    %v601 = vadd.f32 %v597, 1e-05
    %v602 = vrsqrt.pop %v600
    %v603 = vrsqrt.pop %v601
    %v604 = vmul.f32 %v598, %v602
    %v605 = vmul.f32 %v599, %v603
    %v607 = vlaneseq
    %v608 = vshrl.u32 %v607, 7
    %v609 = vsub.s32 0, %v608
    %v610 = vrot.slane %v556, %v609
    %v611 = vlaneseq
    %v612 = vshrl.u32 %v611, 7
    %v613 = vsub.s32 1, %v612
    %v614 = vrot.slane %v556, %v613
    %v617 = vmul.f32 %v604, %v610
    %v618 = vmul.f32 %v605, %v614
    %v620 = vlaneseq
    %v621 = vshrl.u32 %v620, 7
    %v622 = vsub.s32 0, %v621
    %v623 = vrot.slane %v557, %v622
    %v624 = vlaneseq
    %v625 = vshrl.u32 %v624, 7
    %v626 = vsub.s32 1, %v625
    %v627 = vrot.slane %v557, %v626
    %v630 = vadd.f32 %v617, %v623
    %v631 = vadd.f32 %v618, %v627
    %v632 = vld [vmem:[%s5] sm:$0xff]
    %v633 = vld [vmem:[%s5 + $0x8] sm:$0xff]
    %v634 = vld [vmem:[%s5 + $0x10] sm:$0xff]
    %v635 = vld [vmem:[%s5 + $0x18] sm:$0xff]
    %v636 = vld [vmem:[%s5 + $0x20] sm:$0xff]
    %v637 = vld [vmem:[%s5 + $0x28] sm:$0xff]
    %v638 = vld [vmem:[%s5 + $0x30] sm:$0xff]
    %v639 = vld [vmem:[%s5 + $0x38] sm:$0xff]
    %v640 = vld [vmem:[%s5 + $0x40] sm:$0xff]
    %v641 = vld [vmem:[%s5 + $0x48] sm:$0xff]
    %v642 = vld [vmem:[%s5 + $0x50] sm:$0xff]
    %v643 = vld [vmem:[%s5 + $0x58] sm:$0xff]
    %v644 = vld [vmem:[%s5 + $0x60] sm:$0xff]
    %v645 = vld [vmem:[%s5 + $0x68] sm:$0xff]
    %v646 = vld [vmem:[%s5 + $0x70] sm:$0xff]
    %v647 = vld [vmem:[%s5 + $0x78] sm:$0xff]
    %v648 = vld [vmem:[%s5 + $0x80] sm:$0xff]
    %v649 = vld [vmem:[%s5 + $0x88] sm:$0xff]
    %v650 = vld [vmem:[%s5 + $0x90] sm:$0xff]
    %v651 = vld [vmem:[%s5 + $0x98] sm:$0xff]
    %v652 = vld [vmem:[%s5 + $0xa0] sm:$0xff]
    %v653 = vld [vmem:[%s5 + $0xa8] sm:$0xff]
    %v654 = vld [vmem:[%s5 + $0xb0] sm:$0xff]
    %v655 = vld [vmem:[%s5 + $0xb8] sm:$0xff]
    %v656 = vld [vmem:[%s5 + $0xc0] sm:$0xff]
    %v657 = vld [vmem:[%s6] sm:$0x1]
    %v659 = vlaneseq
    %v660 = vshrl.u32 %v659, 7
    %v661 = vsub.s32 0, %v660
    %v662 = vrot.slane %v657, %v661
    %v665 = vsel %vm564, %v631, 0
    %667 = vmatprep.subr.mxu0 0.0
    %668 = vmatpush1.msra.mxu0 %v632
    %669 = vmatprep.subr.mxu0 0.0
    %670 = vmatpush1.msra.mxu0 %v633
    %671 = vmatprep.subr.mxu0 0.0
    %672 = vmatpush1.msra.mxu0 %v634
    %673 = vmatprep.subr.mxu0 0.0
    %674 = vmatpush1.msra.mxu0 %v635
    %675 = vmatprep.subr.mxu0 0.0
    %676 = vmatpush1.msra.mxu0 %v636
    %677 = vmatprep.subr.mxu0 0.0
    %678 = vmatpush1.msra.mxu0 %v637
    %679 = vmatprep.subr.mxu0 0.0
    %680 = vmatpush1.msra.mxu0 %v638
    %681 = vmatprep.subr.mxu0 0.0
    %682 = vmatpush1.msra.mxu0 %v639
    %683 = vmatprep.subr.mxu0 0.0
    %684 = vmatpush1.msra.mxu0 %v640
    %685 = vmatprep.subr.mxu0 0.0
    %686 = vmatpush1.msra.mxu0 %v641
    %687 = vmatprep.subr.mxu0 0.0
    %688 = vmatpush1.msra.mxu0 %v642
    %689 = vmatprep.subr.mxu0 0.0
    %690 = vmatpush1.msra.mxu0 %v643
    %691 = vmatprep.subr.mxu0 0.0
    %692 = vmatpush1.msra.mxu0 %v644
    %693 = vmatprep.subr.mxu0 0.0
    %694 = vmatpush1.msra.mxu0 %v645
    %695 = vmatprep.subr.mxu0 0.0
    %696 = vmatpush1.msra.mxu0 %v646
    %697 = vmatprep.subr.mxu0 0.0
    %698 = vmatpush1.msra.mxu0 %v647
    %699 = vmatprep.subr.mxu0 0.0
    %700 = vmatpush1.msra.mxu0 %v648
    %701 = vmatprep.subr.mxu0 0.0
    %702 = vmatpush1.msra.mxu0 %v649
    %703 = vmatprep.subr.mxu0 0.0
    %704 = vmatpush1.msra.mxu0 %v650
    %705 = vmatprep.subr.mxu0 0.0
    %706 = vmatpush1.msra.mxu0 %v651
    %707 = vmatprep.subr.mxu0 0.0
    %708 = vmatpush1.msra.mxu0 %v652
    %709 = vmatprep.subr.mxu0 0.0
    %710 = vmatpush1.msra.mxu0 %v653
    %711 = vmatprep.subr.mxu0 0.0
    %712 = vmatpush1.msra.mxu0 %v654
    %713 = vmatprep.subr.mxu0 0.0
    %714 = vmatpush1.msra.mxu0 %v655
    %715 = vmatprep.subr.mxu0 0.0
    %716 = vmatpush1.msra.mxu0 %v656
    %717 = vmatprep.subr.mxu0 0.0
    %718 = vmatpush1.msra.mxu0 0.0
    %719 = vmatprep.subr.mxu0 0.0
    %720 = vmatpush1.msra.mxu0 0.0
    %721 = vmatprep.subr.mxu0 0.0
    %722 = vmatpush1.msra.mxu0 0.0
    %723 = vmatprep.subr.mxu0 0.0
    %724 = vmatpush1.msra.mxu0 0.0
    %725 = vmatprep.subr.mxu0 0.0
    %726 = vmatpush1.msra.mxu0 0.0
    %727 = vmatprep.subr.mxu0 0.0
    %728 = vmatpush1.msra.mxu0 0.0
    %729 = vmatprep.subr.mxu0 0.0
    %730 = vmatpush1.msra.mxu0 0.0
    %731 = vmatprep.mubr.f32.mxu0 %v665
    %732 = vmatmul.mubr.f32.gmra.mrb[0].mxu0 %v630
    %v733 = vpop.f32.mrb[0].mxu0
    %v734 = vadd.f32 %v662, %v733
    %v735 = vpop.f32.mrb[0].mxu0
    %736 = vdwg.mxu0
    %v737 = vmax.f32 %v734, 0.0
    %v738 = vld [vmem:[%s7] sm:$0x1]
    %v739 = vld [vmem:[%s8] sm:$0x1]
    %vm740 = vcmask 818176
    %v741 = vsel %vm740, %v737, 0.0
    %v742 = vrot.slane %v741, 4
    %v743 = vadd.f32 %v741, %v742
    %v744 = vrot.slane %v743, 2
    %v745 = vadd.f32 %v743, %v744
    %v746 = vrot.slane %v745, 1
    %v747 = vadd.f32 %v745, %v746
    %v748 = vmul.f32 %v747, %v572
    %v749 = vmul.f32 %v737, %v737
    %v750 = vsel %vm740, %v749, 0.0
    %v751 = vrot.slane %v750, 4
    %v752 = vadd.f32 %v750, %v751
    %v753 = vrot.slane %v752, 2
    %v754 = vadd.f32 %v752, %v753
    %v755 = vrot.slane %v754, 1
    %v756 = vadd.f32 %v754, %v755
    %v757 = vmul.f32 %v756, %v572
    %v758 = vmul.f32 %v748, %v748
    %v759 = vsub.f32 %v757, %v758
    %v760 = vmax.f32 %v759, 0.0
    %v761 = vsub.f32 %v737, %v748
    %v762 = vadd.f32 %v760, 1e-05
    %v763 = vrsqrt.pop %v762
    %v764 = vmul.f32 %v761, %v763
    %v766 = vlaneseq
    %v767 = vshrl.u32 %v766, 7
    %v768 = vsub.s32 0, %v767
    %v769 = vrot.slane %v738, %v768
    %v771 = vmul.f32 %v764, %v769
    %v773 = vlaneseq
    %v774 = vshrl.u32 %v773, 7
    %v775 = vsub.s32 0, %v774
    %v776 = vrot.slane %v739, %v775
    %v778 = vadd.f32 %v771, %v776
    %v779 = vld [vmem:[%s9] sm:$0xff]
    %v780 = vld [vmem:[%s9 + $0x8] sm:$0xff]
    %v781 = vld [vmem:[%s9 + $0x10] sm:$0xff]
    %v782 = vld [vmem:[%s9 + $0x18] sm:$0xff]
    %v783 = vld [vmem:[%s9 + $0x20] sm:$0xff]
    %v784 = vld [vmem:[%s9 + $0x28] sm:$0xff]
    %v785 = vld [vmem:[%s9 + $0x30] sm:$0xff]
    %v786 = vld [vmem:[%s9 + $0x38] sm:$0xff]
    %v787 = vld [vmem:[%s9 + $0x40] sm:$0xff]
    %v788 = vld [vmem:[%s9 + $0x48] sm:$0xff]
    %v789 = vld [vmem:[%s9 + $0x50] sm:$0xff]
    %v790 = vld [vmem:[%s9 + $0x58] sm:$0xff]
    %v791 = vld [vmem:[%s9 + $0x60] sm:$0xf]
    %v792 = vld [vmem:[%s10] sm:$0x1]
    %v794 = vlaneseq
    %v795 = vshrl.u32 %v794, 7
    %v796 = vsub.s32 0, %v795
    %v797 = vrot.slane %v792, %v796
    %v800 = vsel %vm740, %v778, 0
    %vm802 = vcmask 1043456
    %v804 = vsel %vm802, %v791, 0
    %806 = vmatprep.subr.mxu0 0.0
    %807 = vmatpush1.msra.mxu0 %v779
    %808 = vmatprep.subr.mxu0 0.0
    %809 = vmatpush1.msra.mxu0 %v780
    %810 = vmatprep.subr.mxu0 0.0
    %811 = vmatpush1.msra.mxu0 %v781
    %812 = vmatprep.subr.mxu0 0.0
    %813 = vmatpush1.msra.mxu0 %v782
    %814 = vmatprep.subr.mxu0 0.0
    %815 = vmatpush1.msra.mxu0 %v783
    %816 = vmatprep.subr.mxu0 0.0
    %817 = vmatpush1.msra.mxu0 %v784
    %818 = vmatprep.subr.mxu0 0.0
    %819 = vmatpush1.msra.mxu0 %v785
    %820 = vmatprep.subr.mxu0 0.0
    %821 = vmatpush1.msra.mxu0 %v786
    %822 = vmatprep.subr.mxu0 0.0
    %823 = vmatpush1.msra.mxu0 %v787
    %824 = vmatprep.subr.mxu0 0.0
    %825 = vmatpush1.msra.mxu0 %v788
    %826 = vmatprep.subr.mxu0 0.0
    %827 = vmatpush1.msra.mxu0 %v789
    %828 = vmatprep.subr.mxu0 0.0
    %829 = vmatpush1.msra.mxu0 %v790
    %830 = vmatprep.subr.mxu0 0.0
    %831 = vmatpush1.msra.mxu0 %v804
    %832 = vmatprep.subr.mxu0 0.0
    %833 = vmatpush1.msra.mxu0 0.0
    %834 = vmatprep.subr.mxu0 0.0
    %835 = vmatpush1.msra.mxu0 0.0
    %836 = vmatprep.subr.mxu0 0.0
    %837 = vmatpush1.msra.mxu0 0.0
    %838 = vmatprep.subr.mxu0 0.0
    %839 = vmatpush1.msra.mxu0 0.0
    %840 = vmatprep.subr.mxu0 0.0
    %841 = vmatpush1.msra.mxu0 0.0
    %842 = vmatprep.subr.mxu0 0.0
    %843 = vmatpush1.msra.mxu0 0.0
    %844 = vmatprep.subr.mxu0 0.0
    %845 = vmatpush1.msra.mxu0 0.0
    %846 = vmatprep.subr.mxu0 0.0
    %847 = vmatpush1.msra.mxu0 0.0
    %848 = vmatprep.subr.mxu0 0.0
    %849 = vmatpush1.msra.mxu0 0.0
    %850 = vmatprep.subr.mxu0 0.0
    %851 = vmatpush1.msra.mxu0 0.0
    %852 = vmatprep.subr.mxu0 0.0
    %853 = vmatpush1.msra.mxu0 0.0
    %854 = vmatprep.subr.mxu0 0.0
    %855 = vmatpush1.msra.mxu0 0.0
    %856 = vmatprep.subr.mxu0 0.0
    %857 = vmatpush1.msra.mxu0 0.0
    %858 = vmatprep.subr.mxu0 0.0
    %859 = vmatpush1.msra.mxu0 0.0
    %860 = vmatprep.subr.mxu0 0.0
    %861 = vmatpush1.msra.mxu0 0.0
    %862 = vmatprep.subr.mxu0 0.0
    %863 = vmatpush1.msra.mxu0 0.0
    %864 = vmatprep.subr.mxu0 0.0
    %865 = vmatpush1.msra.mxu0 0.0
    %866 = vmatprep.subr.mxu0 0.0
    %867 = vmatpush1.msra.mxu0 0.0
    %868 = vmatprep.subr.mxu0 0.0
    %869 = vmatpush1.msra.mxu0 0.0
    %870 = vmatprep.mubr.f32.mxu0 0.0
    %871 = vmatmul.mubr.f32.gmra.mrb[0].mxu0 %v800
    %v872 = vpop.f32.mrb[0].mxu0
    %v873 = vadd.f32 %v797, %v872
    %v874 = vpop.f32.mrb[0].mxu0
    %875 = vdwg.mxu0
    %v876 = vmax.f32 %v873, 0.0
    %v877 = vld [vmem:[%s11] sm:$0x1]
    %v878 = vld [vmem:[%s12] sm:$0x1]
    %vm879 = vcmask 408576
    %v880 = vsel %vm879, %v876, 0.0
    %v881 = vrot.slane %v880, 4
    %v882 = vadd.f32 %v880, %v881
    %v883 = vrot.slane %v882, 2
    %v884 = vadd.f32 %v882, %v883
    %v885 = vrot.slane %v884, 1
    %v886 = vadd.f32 %v884, %v885
    %v887 = vmul.f32 %v886, %v572
    %v888 = vmul.f32 %v876, %v876
    %v889 = vsel %vm879, %v888, 0.0
    %v890 = vrot.slane %v889, 4
    %v891 = vadd.f32 %v889, %v890
    %v892 = vrot.slane %v891, 2
    %v893 = vadd.f32 %v891, %v892
    %v894 = vrot.slane %v893, 1
    %v895 = vadd.f32 %v893, %v894
    %v896 = vmul.f32 %v895, %v572
    %v897 = vmul.f32 %v887, %v887
    %v898 = vsub.f32 %v896, %v897
    %v899 = vmax.f32 %v898, 0.0
    %v900 = vsub.f32 %v876, %v887
    %v901 = vadd.f32 %v899, 1e-05
    %v902 = vrsqrt.pop %v901
    %v903 = vmul.f32 %v900, %v902
    %v905 = vlaneseq
    %v906 = vshrl.u32 %v905, 7
    %v907 = vsub.s32 0, %v906
    %v908 = vrot.slane %v877, %v907
    %v910 = vmul.f32 %v903, %v908
    %v912 = vlaneseq
    %v913 = vshrl.u32 %v912, 7
    %v914 = vsub.s32 0, %v913
    %v915 = vrot.slane %v878, %v914
    %v917 = vadd.f32 %v910, %v915
    %v918 = vld [vmem:[%s13] sm:$0xff]
    %v919 = vld [vmem:[%s13 + $0x8] sm:$0xff]
    %v920 = vld [vmem:[%s13 + $0x10] sm:$0xff]
    %v921 = vld [vmem:[%s13 + $0x18] sm:$0xff]
    %v922 = vld [vmem:[%s13 + $0x20] sm:$0xff]
    %v923 = vld [vmem:[%s13 + $0x28] sm:$0xff]
    %v924 = vld [vmem:[%s13 + $0x30] sm:$0x3]
    %v925 = vld [vmem:[%s14] sm:$0x1]
    %v927 = vlaneseq
    %v928 = vshrl.u32 %v927, 7
    %v929 = vsub.s32 0, %v928
    %v930 = vrot.slane %v925, %v929
    %v933 = vsel %vm879, %v917, 0
    %vm935 = vcmask 1041408
    %v937 = vsel %vm935, %v924, 0
    %939 = vmatprep.subr.mxu0 0.0
    %940 = vmatpush1.msra.mxu0 %v918
    %941 = vmatprep.subr.mxu0 0.0
    %942 = vmatpush1.msra.mxu0 %v919
    %943 = vmatprep.subr.mxu0 0.0
    %944 = vmatpush1.msra.mxu0 %v920
    %945 = vmatprep.subr.mxu0 0.0
    %946 = vmatpush1.msra.mxu0 %v921
    %947 = vmatprep.subr.mxu0 0.0
    %948 = vmatpush1.msra.mxu0 %v922
    %949 = vmatprep.subr.mxu0 0.0
    %950 = vmatpush1.msra.mxu0 %v923
    %951 = vmatprep.subr.mxu0 0.0
    %952 = vmatpush1.msra.mxu0 %v937
    %953 = vmatprep.subr.mxu0 0.0
    %954 = vmatpush1.msra.mxu0 0.0
    %955 = vmatprep.subr.mxu0 0.0
    %956 = vmatpush1.msra.mxu0 0.0
    %957 = vmatprep.subr.mxu0 0.0
    %958 = vmatpush1.msra.mxu0 0.0
    %959 = vmatprep.subr.mxu0 0.0
    %960 = vmatpush1.msra.mxu0 0.0
    %961 = vmatprep.subr.mxu0 0.0
    %962 = vmatpush1.msra.mxu0 0.0
    %963 = vmatprep.subr.mxu0 0.0
    %964 = vmatpush1.msra.mxu0 0.0
    %965 = vmatprep.subr.mxu0 0.0
    %966 = vmatpush1.msra.mxu0 0.0
    %967 = vmatprep.subr.mxu0 0.0
    %968 = vmatpush1.msra.mxu0 0.0
    %969 = vmatprep.subr.mxu0 0.0
    %970 = vmatpush1.msra.mxu0 0.0
    %971 = vmatprep.subr.mxu0 0.0
    %972 = vmatpush1.msra.mxu0 0.0
    %973 = vmatprep.subr.mxu0 0.0
    %974 = vmatpush1.msra.mxu0 0.0
    %975 = vmatprep.subr.mxu0 0.0
    %976 = vmatpush1.msra.mxu0 0.0
    %977 = vmatprep.subr.mxu0 0.0
    %978 = vmatpush1.msra.mxu0 0.0
    %979 = vmatprep.subr.mxu0 0.0
    %980 = vmatpush1.msra.mxu0 0.0
    %981 = vmatprep.subr.mxu0 0.0
    %982 = vmatpush1.msra.mxu0 0.0
    %983 = vmatprep.subr.mxu0 0.0
    %984 = vmatpush1.msra.mxu0 0.0
    %985 = vmatprep.subr.mxu0 0.0
    %986 = vmatpush1.msra.mxu0 0.0
    %987 = vmatprep.subr.mxu0 0.0
    %988 = vmatpush1.msra.mxu0 0.0
    %989 = vmatprep.subr.mxu0 0.0
    %990 = vmatpush1.msra.mxu0 0.0
    %991 = vmatprep.subr.mxu0 0.0
    %992 = vmatpush1.msra.mxu0 0.0
    %993 = vmatprep.subr.mxu0 0.0
    %994 = vmatpush1.msra.mxu0 0.0
    %995 = vmatprep.subr.mxu0 0.0
    %996 = vmatpush1.msra.mxu0 0.0
    %997 = vmatprep.subr.mxu0 0.0
    %998 = vmatpush1.msra.mxu0 0.0
    %999 = vmatprep.subr.mxu0 0.0
    %1000 = vmatpush1.msra.mxu0 0.0
    %1001 = vmatprep.subr.mxu0 0.0
    %1002 = vmatpush1.msra.mxu0 0.0
    %1003 = vmatprep.mubr.f32.mxu0 0.0
    %1004 = vmatmul.mubr.f32.gmra.mrb[0].mxu0 %v933
    %v1005 = vpop.f32.mrb[0].mxu0
    %v1006 = vadd.f32 %v930, %v1005
    %v1007 = vpop.f32.mrb[0].mxu0
    %1008 = vdwg.mxu0
    %vm1009 = vcmask 80896
    %1010 = vst.msk [vmem:[#allocation2] sm:$0xff] %vm1009, %v1006
    // Predicated region
    $region62: #{forward.1} parent=1 // pred_check
      _
    $region63: #{forward.1} parent=1 // pred_check_branch
      %1012 = sbr.rel (0) target = $region65
    $region64: #{forward.1} parent=1 // pred_region
      %s1014 = ssub.s32 128, 128
      %1015 = vsyncadd [#allocation3], %s1014
      %s1017 = sshll.u32 [#allocation2], 4
      %s1018 = int_to_ptr.vmem [resolvable:$true] %s1017
      %1020 = dma.vmem_to_hbm [thread:$0]  %s1018, 128, %s15, [#allocation3]
    $region65: #{forward.1} parent=1 // pred_fallthru
      _
    // Predicated region
    $region66: #{forward.1} parent=1 // pred_check
      _
    $region67: #{forward.1} parent=1 // pred_check_branch
      %1022 = sbr.rel (0) target = $region69
    $region68: #{forward.1} parent=1 // pred_region
      %1023 = dma.done [#allocation3], 128
    $region69: #{forward.1} parent=1 // pred_fallthru
      _
    %1024 = vsyncpa [#allocation3], 1

</llo_original>
